<compile_context>
chip_gen: v7x
topology: tpu7x:2x2x1
jax: 0.10.0
libtpu: 0.0.40
codegen_flags: <defaults>
</compile_context>

<pallas_src>
import functools

import jax
import jax.numpy as jnp
from jax import lax
from jax.experimental import pallas as pl
from jax.experimental.pallas import tpu as pltpu

# Finite "-inf": keeps the online softmax NaN-free for partially masked tiles.
_MASK_VALUE = -1e30


def _round_up(x, m):
    return (x + m - 1) // m * m


def _vmem_limit_bytes():
    """Generation-aware scoped-VMEM limit (v7x: 64 MiB physical vs 128 MiB)."""
    try:
        cap = int(pltpu.get_tpu_info().vmem_capacity_bytes)
        if cap > 0:
            return min(cap * 3 // 4, 96 * 1024 * 1024)
    except Exception:
        pass
    return 48 * 1024 * 1024  # safe on every generation (fits v7x's 64 MiB)


def _flash_attn_kernel(xq_ref, xkv_ref, wq_ref, wkv_ref, o_ref,
                       q_scr, m_scr, l_scr, acc_scr, *,
                       mxu_dtype, approx_recip):
    """grid = (batch_blocks, q_tiles, kv_tiles); the KV axis is the reduction."""
    bb, tq, C = xq_ref.shape
    tk = xkv_ref.shape[1]
    dk_pad = wq_ref.shape[1]

    qi = pl.program_id(1)
    ki = pl.program_id(2)
    nk = pl.num_programs(2)

    q_start = qi * tq
    k_start = ki * tk

    @pl.when(ki == 0)
    def _():
        # Project Q once per (batch-block, q-tile).  The bf16 cast happens
        # in-kernel (x arrives at its HBM dtype); 1/sqrt(d_k) is already
        # folded into wq by the wrapper.
        xq = xq_ref[...].astype(mxu_dtype).reshape(bb * tq, C)
        q = jnp.dot(xq, wq_ref[...], preferred_element_type=jnp.float32)
        q_scr[...] = q.reshape(bb, tq, dk_pad).astype(mxu_dtype)
        m_scr[...] = jnp.full(m_scr.shape, _MASK_VALUE, dtype=m_scr.dtype)
        l_scr[...] = jnp.zeros(l_scr.shape, dtype=l_scr.dtype)
        acc_scr[...] = jnp.zeros(acc_scr.shape, dtype=acc_scr.dtype)

    # Skip KV tiles that lie entirely above the causal diagonal.
    @pl.when(k_start <= q_start + (tq - 1))
    def _():
        # Fused K/V projection for this KV tile: one wide MXU pass against
        # [wk_pad | wv]; k occupies lanes [0, dk_pad) and v starts on the
        # 128-lane boundary dk_pad (both slices are lane-aligned).
        xkv = xkv_ref[...].astype(mxu_dtype).reshape(bb * tk, C)
        proj = jnp.dot(xkv, wkv_ref[...], preferred_element_type=jnp.float32)
        proj = proj.reshape(bb, tk, proj.shape[-1])
        k = proj[:, :, :dk_pad].astype(mxu_dtype)
        v = proj[:, :, dk_pad:].astype(mxu_dtype)

        # Scores: contract the feature dim directly (no explicit k transpose).
        s = jnp.einsum("btd,bsd->bts", q_scr[...], k,
                       preferred_element_type=jnp.float32)

        # Causal mask from a single (tq, tk) iota pair, broadcast over batch.
        row = lax.broadcasted_iota(jnp.int32, (tq, tk), 0) + q_start
        col = lax.broadcasted_iota(jnp.int32, (tq, tk), 1) + k_start
        s = jnp.where((col <= row)[None, :, :], s, _MASK_VALUE)

        # Online (flash) softmax update in f32.
        m_prev = m_scr[...]
        m_new = jnp.maximum(m_prev, jnp.max(s, axis=-1, keepdims=True))
        alpha = jnp.exp(m_prev - m_new)
        # TODO(synk): on v6e/v7x the exp could run in bf16 on the EUP (~2x
        # transcendental rate); kept in f32 here for v5e compatibility.
        e = jnp.exp(s - m_new)
        l_scr[...] = alpha * l_scr[...] + jnp.sum(e, axis=-1, keepdims=True)
        pv = jnp.einsum("bts,bsd->btd", e.astype(mxu_dtype), v,
                        preferred_element_type=jnp.float32)
        acc_scr[...] = alpha * acc_scr[...] + pv
        m_scr[...] = m_new

    @pl.when(ki == nk - 1)
    def _():
        # Normalization folded into the output with an EUP reciprocal.
        inv = pl.reciprocal(l_scr[...], approx=approx_recip)
        o_ref[...] = (acc_scr[...] * inv).astype(o_ref.dtype)


def self_attention_single_head(x, wq, wk, wv, *, use_bf16=True):
    """Causal single-head self-attention (SelfAttentionSingleHead.forward).

    x:  (B, T, C)
    wq, wk: (C, d_k)  -- transposed weights of the query / key Linear layers
    wv: (C, d_v)
    Returns (B, T, d_v) in x.dtype.
    """
    B, T, C = x.shape
    d_k = wq.shape[1]
    d_v = wv.shape[1]
    out_dtype = x.dtype
    mxu_dtype = jnp.bfloat16 if use_bf16 else jnp.float32
    vmem_limit = _vmem_limit_bytes()

    # Weights: fold 1/sqrt(d_k) into wq; zero-pad d_k to a 128-lane multiple so
    # the q/k slices and the q.k^T contraction are lane aligned.
    dk_pad = _round_up(d_k, 128)
    scale = float(d_k) ** -0.5
    wq_p = jnp.pad(wq * scale, ((0, 0), (0, dk_pad - d_k)))
    wk_p = jnp.pad(wk, ((0, 0), (0, dk_pad - d_k)))
    w_q = wq_p.astype(mxu_dtype)
    w_kv = jnp.concatenate([wk_p, wv], axis=1).astype(mxu_dtype)  # [k | v]

    # Tiling: full-T tiles for short sequences; KV/Q tiling (flash) for long
    # ones so the score buffer stays O(tq*tk) regardless of T.
    if T <= 512:
        Tp = _round_up(T, 8)      # keep the (bb*T, C) reshape relayout-free
        tq = tk = Tp
    else:
        tq, tk = 256, 512
        Tp = _round_up(T, tk)
    nq = Tp // tq
    nk = Tp // tk

    # Batch blocking: fill MXU sublanes (~512 projection rows per step), but
    # keep >= 2 parallel grid steps when B >= 2 so both v7x TensorCores get
    # work.  Awkward B is padded instead of degrading bb.
    rows_target = 512
    bb = max(1, min(B, rows_target // tq))
    if nq == 1 and B >= 2:
        bb = min(bb, max(1, B // 2))

    def _step_vmem(bbv):
        itm_x = x.dtype.itemsize
        itm_m = jnp.dtype(mxu_dtype).itemsize
        xq_b = 2 * bbv * tq * C * itm_x
        xkv_b = 2 * bbv * tk * C * itm_x
        w_b = 2 * (C * dk_pad + C * (dk_pad + d_v)) * itm_m
        out_b = 2 * bbv * tq * max(d_v, 128) * itm_x
        scr_b = bbv * tq * (dk_pad * itm_m + 2 * 128 * 4 + max(d_v, 128) * 4)
        tmp_b = 4 * bbv * tq * max(tk, 128) * 4
        return xq_b + xkv_b + w_b + out_b + scr_b + tmp_b

    while bb > 1 and _step_vmem(bb) > vmem_limit * 6 // 10:
        bb = max(1, bb // 2)

    Bp = _round_up(B, bb)
    if Bp != B or Tp != T:
        # Zero padding is safe: the causal mask already excludes padded key
        # columns (col >= T > row for real rows) and padded rows are sliced off.
        x = jnp.pad(x, ((0, Bp - B), (0, Tp - T), (0, 0)))
    nb = Bp // bb

    kernel = functools.partial(_flash_attn_kernel, mxu_dtype=mxu_dtype,
                               approx_recip=use_bf16)

    out = pl.pallas_call(
        kernel,
        out_shape=jax.ShapeDtypeStruct((Bp, Tp, d_v), out_dtype),
        grid=(nb, nq, nk),
        in_specs=[
            pl.BlockSpec((bb, tq, C), lambda b, qi, ki: (b, qi, 0)),    # x (Q tile)
            pl.BlockSpec((bb, tk, C), lambda b, qi, ki: (b, ki, 0)),    # x (KV tile)
            pl.BlockSpec((C, dk_pad), lambda b, qi, ki: (0, 0)),        # wq*scale (padded)
            pl.BlockSpec((C, dk_pad + d_v), lambda b, qi, ki: (0, 0)),  # [wk_pad | wv]
        ],
        out_specs=pl.BlockSpec((bb, tq, d_v), lambda b, qi, ki: (b, qi, 0)),
        scratch_shapes=[
            pltpu.VMEM((bb, tq, dk_pad), mxu_dtype),   # projected Q tile
            pltpu.VMEM((bb, tq, 1), jnp.float32),      # running max m
            pltpu.VMEM((bb, tq, 1), jnp.float32),      # running denom l
            pltpu.VMEM((bb, tq, d_v), jnp.float32),    # output accumulator
        ],
        compiler_params=pltpu.CompilerParams(
            dimension_semantics=("parallel", "parallel", "arbitrary"),
            vmem_limit_bytes=vmem_limit,
        ),
    )(x, x, w_q, w_kv)

    if Bp != B or Tp != T:
        out = out[:B, :T]
    return out


def _reference(x, wq, wk, wv):
    """Pure-JAX reference mirroring the PyTorch forward."""
    T = x.shape[1]
    d_k = wq.shape[1]
    q = x @ wq
    k = x @ wk
    v = x @ wv
    wei = jnp.einsum("btd,bsd->bts", q, k) * (float(d_k) ** -0.5)
    tril = jnp.tril(jnp.ones((T, T), dtype=bool))
    wei = jnp.where(tril, wei, -jnp.inf)
    wei = jax.nn.softmax(wei, axis=-1)
    return wei @ v


if __name__ == "__main__":
    # Small shapes consistent with the module: B=2, T(seq)=8, n_embd=32, d_k=d_v=32.
    B, T, C = 2, 8, 32
    d_k = d_v = C

    key = jax.random.PRNGKey(0)
    kx, kq, kk, kv = jax.random.split(key, 4)

    x = jax.random.normal(kx, (B, T, C), dtype=jnp.float32)
    # Deterministic "Linear(bias=False)" weights, stored as (in, out) = W_torch.T
    wq = jax.random.normal(kq, (C, d_k), dtype=jnp.float32) * (C ** -0.5)
    wk = jax.random.normal(kk, (C, d_k), dtype=jnp.float32) * (C ** -0.5)
    wv = jax.random.normal(kv, (C, d_v), dtype=jnp.float32) * (C ** -0.5)

    ref = _reference(x, wq, wk, wv)

    # Full-precision path: must match the reference tightly.
    out_f32 = jax.block_until_ready(
        self_attention_single_head(x, wq, wk, wv, use_bf16=False))
    assert out_f32.shape == (B, T, d_v)
    assert jnp.allclose(out_f32, ref, atol=1e-4, rtol=1e-4), "f32 path mismatch"

    # Fast path (bf16 MXU operands, f32 accumulation / f32 softmax).
    out_bf16 = jax.block_until_ready(
        self_attention_single_head(x, wq, wk, wv, use_bf16=True))
    assert out_bf16.shape == (B, T, d_v)
    assert jnp.allclose(out_bf16, ref, atol=5e-2, rtol=5e-2), "bf16 path mismatch"

    print("KERNEL_OK")
</pallas_src>

<mosaic_0001>
module attributes {stable_mosaic.version = 11 : i64} {
  func.func @_flash_attn_kernel(%arg0: i32, %arg1: i32, %arg2: i32, %arg3: memref<1x8x32xf32, #tpu.memory_space<vmem>>, %arg4: memref<1x8x32xf32, #tpu.memory_space<vmem>>, %arg5: memref<32x128xf32, #tpu.memory_space<vmem>>, %arg6: memref<32x160xf32, #tpu.memory_space<vmem>>, %arg7: memref<1x8x32xf32, #tpu.memory_space<vmem>>, %arg8: memref<1x8x128xf32, #tpu.memory_space<vmem>>, %arg9: memref<1x8x1xf32, #tpu.memory_space<vmem>>, %arg10: memref<1x8x1xf32, #tpu.memory_space<vmem>>, %arg11: memref<1x8x32xf32, #tpu.memory_space<vmem>>) attributes {dimension_semantics = [#tpu.dimension_semantics<parallel>, #tpu.dimension_semantics<parallel>, #tpu.dimension_semantics<arbitrary>], iteration_bounds = array<i64: 2, 1, 1>, scalar_prefetch = 0 : i64, scratch_operands = 4 : i64, tpu.core_type = #tpu.core_type<tc>, window_params = [{transform_indices = @transform_0, window_bounds = array<i64: 1, 8, 32>}, {transform_indices = @transform_1, window_bounds = array<i64: 1, 8, 32>}, {pipeline_mode = #tpu.pipeline_mode<synchronous>, transform_indices = @transform_2, window_bounds = array<i64: 32, 128>}, {pipeline_mode = #tpu.pipeline_mode<synchronous>, transform_indices = @transform_3, window_bounds = array<i64: 32, 160>}, {transform_indices = @transform_4, window_bounds = array<i64: 1, 8, 32>}]} {
    %c8_i32 = arith.constant 8 : i32
    %0 = arith.muli %arg1, %c8_i32 : i32
    %c8_i32_0 = arith.constant 8 : i32
    %1 = arith.muli %arg2, %c8_i32_0 : i32
    %c0_i32 = arith.constant 0 : i32
    %2 = arith.cmpi eq, %arg2, %c0_i32 : i32
    %3 = arith.extui %2 : i1 to i32
    %c0_i32_1 = arith.constant 0 : i32
    %4 = arith.cmpi ne, %3, %c0_i32_1 : i32
    scf.if %4 {
      %c0 = arith.constant 0 : index
      %c0_5 = arith.constant 0 : index
      %c0_6 = arith.constant 0 : index
      %12 = vector.load %arg3[%c0, %c0_5, %c0_6] : memref<1x8x32xf32, #tpu.memory_space<vmem>>, vector<1x8x32xf32>
      %13 = vector.shape_cast %12 : vector<1x8x32xf32> to vector<8x32xf32>
      %c0_7 = arith.constant 0 : index
      %c0_8 = arith.constant 0 : index
      %14 = vector.load %arg5[%c0_7, %c0_8] : memref<32x128xf32, #tpu.memory_space<vmem>>, vector<32x128xf32>
      %cst = arith.constant dense<0.000000e+00> : vector<8x128xf32>
      %15 = tpu.matmul %13, %14, %cst {dimension_numbers = #tpu.dot_dimension_numbers<[1], [0], [0], [1], [0, 0, 1, 1], [], []>} : vector<8x32xf32>, vector<32x128xf32>, vector<8x128xf32> -> vector<8x128xf32>
      %16 = vector.shape_cast %15 : vector<8x128xf32> to vector<1x8x128xf32>
      %c0_9 = arith.constant 0 : index
      %c0_10 = arith.constant 0 : index
      %c0_11 = arith.constant 0 : index
      %17 = vector.load %arg8[%c0_9, %c0_10, %c0_11] : memref<1x8x128xf32, #tpu.memory_space<vmem>>, vector<1x8x128xf32>
      tpu.vector_store %arg8[%c0_9, %c0_10, %c0_11], %16 {strides = array<i32>} : memref<1x8x128xf32, #tpu.memory_space<vmem>>, vector<1x8x128xf32>,
      %cst_12 = arith.constant -1.000000e+30 : f32
      %18 = vector.broadcast %cst_12 : f32 to vector<1x8x1xf32>
      %c0_13 = arith.constant 0 : index
      %c0_14 = arith.constant 0 : index
      %c0_15 = arith.constant 0 : index
      %19 = vector.load %arg9[%c0_13, %c0_14, %c0_15] : memref<1x8x1xf32, #tpu.memory_space<vmem>>, vector<1x8x1xf32>
      tpu.vector_store %arg9[%c0_13, %c0_14, %c0_15], %18 {strides = array<i32>} : memref<1x8x1xf32, #tpu.memory_space<vmem>>, vector<1x8x1xf32>,
      %cst_16 = arith.constant 0.000000e+00 : f32
      %20 = vector.broadcast %cst_16 : f32 to vector<1x8x1xf32>
      %c0_17 = arith.constant 0 : index
      %c0_18 = arith.constant 0 : index
      %c0_19 = arith.constant 0 : index
      %21 = vector.load %arg10[%c0_17, %c0_18, %c0_19] : memref<1x8x1xf32, #tpu.memory_space<vmem>>, vector<1x8x1xf32>
      tpu.vector_store %arg10[%c0_17, %c0_18, %c0_19], %20 {strides = array<i32>} : memref<1x8x1xf32, #tpu.memory_space<vmem>>, vector<1x8x1xf32>,
      %cst_20 = arith.constant 0.000000e+00 : f32
      %22 = vector.broadcast %cst_20 : f32 to vector<1x8x32xf32>
      %c0_21 = arith.constant 0 : index
      %c0_22 = arith.constant 0 : index
      %c0_23 = arith.constant 0 : index
      %23 = vector.load %arg11[%c0_21, %c0_22, %c0_23] : memref<1x8x32xf32, #tpu.memory_space<vmem>>, vector<1x8x32xf32>
      tpu.vector_store %arg11[%c0_21, %c0_22, %c0_23], %22 {strides = array<i32>} : memref<1x8x32xf32, #tpu.memory_space<vmem>>, vector<1x8x32xf32>,
    } else {
    }
    %c7_i32 = arith.constant 7 : i32
    %5 = arith.addi %0, %c7_i32 : i32
    %6 = arith.cmpi sle, %1, %5 : i32
    %7 = arith.extui %6 : i1 to i32
    %c0_i32_2 = arith.constant 0 : i32
    %8 = arith.cmpi ne, %7, %c0_i32_2 : i32
    scf.if %8 {
      %c0 = arith.constant 0 : index
      %c0_5 = arith.constant 0 : index
      %c0_6 = arith.constant 0 : index
      %12 = vector.load %arg4[%c0, %c0_5, %c0_6] : memref<1x8x32xf32, #tpu.memory_space<vmem>>, vector<1x8x32xf32>
      %13 = vector.shape_cast %12 : vector<1x8x32xf32> to vector<8x32xf32>
      %c0_7 = arith.constant 0 : index
      %c0_8 = arith.constant 0 : index
      %14 = vector.load %arg6[%c0_7, %c0_8] : memref<32x160xf32, #tpu.memory_space<vmem>>, vector<32x160xf32>
      %cst = arith.constant dense<0.000000e+00> : vector<8x160xf32>
      %15 = tpu.matmul %13, %14, %cst {dimension_numbers = #tpu.dot_dimension_numbers<[1], [0], [0], [1], [0, 0, 1, 1], [], []>} : vector<8x32xf32>, vector<32x160xf32>, vector<8x160xf32> -> vector<8x160xf32>
      %16 = vector.shape_cast %15 : vector<8x160xf32> to vector<1x8x160xf32>
      %17 = vector.extract_strided_slice %16 {offsets = [0, 0, 0], sizes = [1, 8, 128], strides = [1, 1, 1]} : vector<1x8x160xf32> to vector<1x8x128xf32>
      %18 = vector.extract_strided_slice %16 {offsets = [0, 0, 128], sizes = [1, 8, 32], strides = [1, 1, 1]} : vector<1x8x160xf32> to vector<1x8x32xf32>
      %c0_9 = arith.constant 0 : index
      %c0_10 = arith.constant 0 : index
      %c0_11 = arith.constant 0 : index
      %19 = vector.load %arg8[%c0_9, %c0_10, %c0_11] : memref<1x8x128xf32, #tpu.memory_space<vmem>>, vector<1x8x128xf32>
      "tpu.trace_start"() <{level = 10 : i32, message = "btd,bsd->bts"}> : () -> ()
      %cst_12 = arith.constant dense<0.000000e+00> : vector<1x8x8xf32>
      %20 = tpu.matmul %19, %17, %cst_12 {dimension_numbers = #tpu.dot_dimension_numbers<[2], [2], [1], [1], [0, 0, 0, 1, 1, 1], [0], [0]>} : vector<1x8x128xf32>, vector<1x8x128xf32>, vector<1x8x8xf32> -> vector<1x8x8xf32>
      "tpu.trace_stop"() : () -> ()
      %21 = tpu.iota {dimensions = array<i32: 0>} : vector<8x8xi32>
      %22 = vector.broadcast %0 : i32 to vector<8x8xi32>
      %23 = arith.addi %21, %22 : vector<8x8xi32>
      %24 = tpu.iota {dimensions = array<i32: 1>} : vector<8x8xi32>
      %25 = vector.broadcast %1 : i32 to vector<8x8xi32>
      %26 = arith.addi %24, %25 : vector<8x8xi32>
      %27 = arith.cmpi sle, %26, %23 : vector<8x8xi32>
      %28 = vector.shape_cast %27 : vector<8x8xi1> to vector<1x8x8xi1>
      %cst_13 = arith.constant -1.000000e+30 : f32
      %29 = vector.broadcast %cst_13 : f32 to vector<1x8x8xf32>
      %30 = arith.select %28, %20, %29 : vector<1x8x8xi1>, vector<1x8x8xf32>
      %c0_14 = arith.constant 0 : index
      %c0_15 = arith.constant 0 : index
      %c0_16 = arith.constant 0 : index
      %31 = vector.load %arg9[%c0_14, %c0_15, %c0_16] : memref<1x8x1xf32, #tpu.memory_space<vmem>>, vector<1x8x1xf32>
      %cst_17 = arith.constant dense<0xFF800000> : vector<1x8xf32>
      %32 = vector.multi_reduction <maximumf>, %30, %cst_17 [2] : vector<1x8x8xf32> to vector<1x8xf32>
      %33 = vector.shape_cast %32 : vector<1x8xf32> to vector<1x8x1xf32>
      %34 = arith.maximumf %31, %33 : vector<1x8x1xf32>
      %35 = arith.subf %31, %34 : vector<1x8x1xf32>
      %36 = math.exp %35 : vector<1x8x1xf32>
      %37 = vector.broadcast %34 : vector<1x8x1xf32> to vector<1x8x8xf32>
      %38 = arith.subf %30, %37 : vector<1x8x8xf32>
      %39 = math.exp %38 : vector<1x8x8xf32>
      %c0_18 = arith.constant 0 : index
      %c0_19 = arith.constant 0 : index
      %c0_20 = arith.constant 0 : index
      %40 = vector.load %arg10[%c0_18, %c0_19, %c0_20] : memref<1x8x1xf32, #tpu.memory_space<vmem>>, vector<1x8x1xf32>
      %41 = arith.mulf %36, %40 : vector<1x8x1xf32>
      %cst_21 = arith.constant dense<0.000000e+00> : vector<1x8xf32>
      %42 = vector.multi_reduction <add>, %39, %cst_21 [2] : vector<1x8x8xf32> to vector<1x8xf32>
      %43 = vector.shape_cast %42 : vector<1x8xf32> to vector<1x8x1xf32>
      %44 = arith.addf %41, %43 : vector<1x8x1xf32>
      %c0_22 = arith.constant 0 : index
      %c0_23 = arith.constant 0 : index
      %c0_24 = arith.constant 0 : index
      %45 = vector.load %arg10[%c0_22, %c0_23, %c0_24] : memref<1x8x1xf32, #tpu.memory_space<vmem>>, vector<1x8x1xf32>
      tpu.vector_store %arg10[%c0_22, %c0_23, %c0_24], %44 {strides = array<i32>} : memref<1x8x1xf32, #tpu.memory_space<vmem>>, vector<1x8x1xf32>,
      "tpu.trace_start"() <{level = 10 : i32, message = "bts,bsd->btd"}> : () -> ()
      %cst_25 = arith.constant dense<0.000000e+00> : vector<1x8x32xf32>
      %46 = tpu.matmul %39, %18, %cst_25 {dimension_numbers = #tpu.dot_dimension_numbers<[2], [1], [1], [2], [0, 0, 0, 1, 1, 2], [0], [0]>} : vector<1x8x8xf32>, vector<1x8x32xf32>, vector<1x8x32xf32> -> vector<1x8x32xf32>
      "tpu.trace_stop"() : () -> ()
      %c0_26 = arith.constant 0 : index
      %c0_27 = arith.constant 0 : index
      %c0_28 = arith.constant 0 : index
      %47 = vector.load %arg11[%c0_26, %c0_27, %c0_28] : memref<1x8x32xf32, #tpu.memory_space<vmem>>, vector<1x8x32xf32>
      %48 = vector.broadcast %36 : vector<1x8x1xf32> to vector<1x8x32xf32>
      %49 = arith.mulf %48, %47 : vector<1x8x32xf32>
      %50 = arith.addf %49, %46 : vector<1x8x32xf32>
      %c0_29 = arith.constant 0 : index
      %c0_30 = arith.constant 0 : index
      %c0_31 = arith.constant 0 : index
      %51 = vector.load %arg11[%c0_29, %c0_30, %c0_31] : memref<1x8x32xf32, #tpu.memory_space<vmem>>, vector<1x8x32xf32>
      tpu.vector_store %arg11[%c0_29, %c0_30, %c0_31], %50 {strides = array<i32>} : memref<1x8x32xf32, #tpu.memory_space<vmem>>, vector<1x8x32xf32>,
      %c0_32 = arith.constant 0 : index
      %c0_33 = arith.constant 0 : index
      %c0_34 = arith.constant 0 : index
      %52 = vector.load %arg9[%c0_32, %c0_33, %c0_34] : memref<1x8x1xf32, #tpu.memory_space<vmem>>, vector<1x8x1xf32>
      tpu.vector_store %arg9[%c0_32, %c0_33, %c0_34], %34 {strides = array<i32>} : memref<1x8x1xf32, #tpu.memory_space<vmem>>, vector<1x8x1xf32>,
    } else {
    }
    %c0_i32_3 = arith.constant 0 : i32
    %9 = arith.cmpi eq, %arg2, %c0_i32_3 : i32
    %10 = arith.extui %9 : i1 to i32
    %c0_i32_4 = arith.constant 0 : i32
    %11 = arith.cmpi ne, %10, %c0_i32_4 : i32
    scf.if %11 {
      %c0 = arith.constant 0 : index
      %c0_5 = arith.constant 0 : index
      %c0_6 = arith.constant 0 : index
      %12 = vector.load %arg10[%c0, %c0_5, %c0_6] : memref<1x8x1xf32, #tpu.memory_space<vmem>>, vector<1x8x1xf32>
      %13 = tpu.reciprocal %12 : vector<1x8x1xf32> -> vector<1x8x1xf32>
      %c0_7 = arith.constant 0 : index
      %c0_8 = arith.constant 0 : index
      %c0_9 = arith.constant 0 : index
      %14 = vector.load %arg11[%c0_7, %c0_8, %c0_9] : memref<1x8x32xf32, #tpu.memory_space<vmem>>, vector<1x8x32xf32>
      %15 = vector.broadcast %13 : vector<1x8x1xf32> to vector<1x8x32xf32>
      %16 = arith.mulf %14, %15 : vector<1x8x32xf32>
      %c0_10 = arith.constant 0 : index
      %c0_11 = arith.constant 0 : index
      %c0_12 = arith.constant 0 : index
      %17 = vector.load %arg7[%c0_10, %c0_11, %c0_12] : memref<1x8x32xf32, #tpu.memory_space<vmem>>, vector<1x8x32xf32>
      tpu.vector_store %arg7[%c0_10, %c0_11, %c0_12], %16 {strides = array<i32>} : memref<1x8x32xf32, #tpu.memory_space<vmem>>, vector<1x8x32xf32>,
    } else {
    }
    return
  }
  func.func @transform_0(%arg0: i32, %arg1: i32, %arg2: i32) -> (i32, i32, i32) {
    %c0_i32 = arith.constant 0 : i32
    %c0_i32_0 = arith.constant 0 : i32
    return %arg0, %arg1, %c0_i32 : i32, i32, i32
  }
  func.func @transform_1(%arg0: i32, %arg1: i32, %arg2: i32) -> (i32, i32, i32) {
    %c0_i32 = arith.constant 0 : i32
    %c0_i32_0 = arith.constant 0 : i32
    return %arg0, %arg2, %c0_i32 : i32, i32, i32
  }
  func.func @transform_2(%arg0: i32, %arg1: i32, %arg2: i32) -> (i32, i32) {
    %c0_i32 = arith.constant 0 : i32
    %c0_i32_0 = arith.constant 0 : i32
    %c0_i32_1 = arith.constant 0 : i32
    return %c0_i32, %c0_i32_0 : i32, i32
  }
  func.func @transform_3(%arg0: i32, %arg1: i32, %arg2: i32) -> (i32, i32) {
    %c0_i32 = arith.constant 0 : i32
    %c0_i32_0 = arith.constant 0 : i32
    %c0_i32_1 = arith.constant 0 : i32
    return %c0_i32, %c0_i32_0 : i32, i32
  }
  func.func @transform_4(%arg0: i32, %arg1: i32, %arg2: i32) -> (i32, i32, i32) {
    %c0_i32 = arith.constant 0 : i32
    %c0_i32_0 = arith.constant 0 : i32
    return %arg0, %arg1, %c0_i32 : i32, i32, i32
  }
}

</mosaic_0001>

<llo_original>
// kernel: tpu_custom_call.1
$region0: #{tpu_custom_call.1}
  #allocation0 [shape = 'u32[]', space=smem, size = 0x4, offset = 0x4, fixed_abs, tag = 'smem constant byte address 0x4 - core index']
  #allocation1 [shape = 'u32[144,128]{1,0:T(1,128)}', space=vmem, size = 0x12000, scoped, tag = 'internal scratch']
  #allocation2 [shape = 'f32[1,8,128]{2,1,0:T(8,128)}', space=vmem, size = 0x1000, scoped, tag = 'scratch operand']
  #allocation3 [shape = 'f32[1,8,1]{2,1,0:T(8,128)}', space=vmem, size = 0x1000, scoped, tag = 'scratch operand']
  #allocation4 [shape = 'f32[1,8,1]{2,1,0:T(8,128)}', space=vmem, size = 0x1000, scoped, tag = 'scratch operand']
  #allocation5 [shape = 'f32[1,8,32]{2,1,0:T(8,128)}', space=vmem, size = 0x1000, scoped, tag = 'scratch operand']
  %s0 = inlined_call_operand.hbm [shape: f32[2,8,32], index: 0, kind: input, shape index: {}]
  %s1 = inlined_call_operand.hbm [shape: f32[2,8,32], index: 1, kind: input, shape index: {}]
  %s2 = inlined_call_operand.hbm [shape: f32[32,128], index: 2, kind: input, shape index: {}]
  %s3 = inlined_call_operand.hbm [shape: f32[32,160], index: 3, kind: input, shape index: {}]
  %s4 = inlined_call_operand.hbm [shape: f32[2,8,32], index: 4, kind: output, shape index: {}]
  %s5 = sld [smem:[#allocation0]]
  $region77: #{tpu_custom_call.1} parent=0
    _
  %s7 = ssub.s32 1, %s5
  %s8 = scalar_select 0, %s7, %s5
  $region1: #{tpu_custom_call.1} parent=0
    #allocation6 [shape = 'u8[8192]{0}', space=vmem, size = 0x2000, scoped, tag = 'input window, operand 0']
    #allocation7 [shape = 's32[2]{0}', space=sflag, size = 0x8, scoped, tag = 'scoped memory for tpu_custom_call.1']
    #allocation8 [shape = 's32[2]{0}', space=sflag, size = 0x8, scoped, tag = 'scoped memory for tpu_custom_call.1']
    #allocation9 [shape = 'u8[8192]{0}', space=vmem, size = 0x2000, scoped, tag = 'input window, operand 1']
    #allocation10 [shape = 's32[2]{0}', space=sflag, size = 0x8, scoped, tag = 'scoped memory for tpu_custom_call.1']
    #allocation11 [shape = 'u8[16384]{0}', space=vmem, size = 0x4000, scoped, tag = 'input window, operand 2, single buffered']
    #allocation12 [shape = 'u8[32768]{0}', space=vmem, size = 0x8000, scoped, tag = 'input window, operand 3, single buffered']
    #allocation13 [shape = 's32[1]{0}', space=sflag, size = 0x4, scoped, tag = 'scoped memory for tpu_custom_call.1']
    #allocation14 [shape = 'u8[8192]{0}', space=vmem, size = 0x2000, scoped, tag = 'output window, operand 0']
    %9 = vsyncpa [#allocation7], 0
    %s10 = scalar_lea.sflag [#allocation7], 1
    %11 = vsyncpa %s10, 0
    %12 = vsyncpa [#allocation10], 0
    %s13 = scalar_lea.sflag [#allocation10], 1
    %14 = vsyncpa %s13, 0
    %15 = vsyncpa [#allocation13], 0
    %16 = vsyncpa [#allocation8], 0
    %s17 = scalar_lea.sflag [#allocation8], 1
    %18 = vsyncpa %s17, 0
    loop: start=0, step=1, limit=4
    $region2: #{tpu_custom_call.1} parent=1 // loop_pre_header
      _
    $region3: #{tpu_custom_call.1} parent=1 // loop_header
      %s20 = sphi 0, %s24
      %p21 = scmp.ge.s32.totalorder %s20, 4
      %s27 = sphi 0, %s46
      %s28 = sphi 0, %s42
      %s29 = sphi 0, %s38
      %s30 = sphi 0, %s27
      %s31 = sphi 0, %s28
      %s32 = sphi 0, %s29
      %s33 = sphi 0, %s30
      %s34 = sphi 0, %s31
      %s35 = sphi 0, %s32
      %s51 = sphi 0, %s53
      %s54 = sphi 0, %s51
      %s55 = sphi 0, %s54
      %s71 = sphi 0, %s55
      %s79 = sphi 0, %s81
      %s82 = sphi 0, %s79
      %s83 = sphi 0, %s82
      %s99 = sphi 0, %s83
      %s103 = sphi 0, %s103
      %s105 = sphi 0, %s103
      %s106 = sphi 0, %s105
      %s120 = sphi 0, %s106
      %s124 = sphi 0, %s124
      %s126 = sphi 0, %s124
      %s127 = sphi 0, %s126
      %s141 = sphi 0, %s127
      %s149 = sphi 0, %s151
      %s152 = sphi 0, %s149
      %s153 = sphi 0, %s152
      %s169 = sphi 0, %s153
    $region4: #{tpu_custom_call.1} parent=1 // loop_header_branch
      %23 = sbr.rel (%p21) target = $region8
    $region5: #{tpu_custom_call.1} parent=1 // loop_body
      %s25 = ssub.s32 %s20, 1
      %s26 = ssub.s32 %s20, 2
      %s36 = sadd.s32 1, %s29
      %p37 = scmp.ge.s32.totalorder %s36, 1
      %s38 = scalar_select %p37, 0, %s36
      %s39 = sadd.s32 1, %s28
      %s40 = scalar_select %p37, %s39, %s28
      %p41 = scmp.ge.s32.totalorder %s40, 1
      %s42 = scalar_select %p41, 0, %s40
      %s43 = sadd.s32 1, %s27
      %s44 = scalar_select %p41, %s43, %s27
      %p45 = scmp.ge.s32.totalorder %s44, 2
      %s46 = scalar_select %p45, 0, %s44
      %s47 = ssub.s32 %s27, %s46
      %s48 = ssub.s32 %s28, %s42
      %s49 = sor.u32 %s47, %s48
      %p50 = scmp.eq.s32.totalorder %s49, 0
      %s52 = sadd.s32 %s51, 1
      %s53 = scalar_select %p50, %s51, %s52
      %p56 = pneg %p50
      %p57 = scmp.eq.s32.totalorder %s20, 1
      %p58 = por %p56, %p57
      %p59 = scmp.ne.s32.totalorder %s51, %s54
      %p60 = scmp.eq.s32.totalorder %s20, 0
      %p61 = por %p59, %p60
      %p62 = scmp.ne.s32.totalorder %s51, %s54
      %p63 = scmp.eq.s32.totalorder %s25, 1
      %p64 = por %p62, %p63
      %p65 = scmp.ne.s32.totalorder %s54, %s55
      %p66 = scmp.eq.s32.totalorder %s25, 0
      %p67 = por %p65, %p66
      %p68 = scmp.ne.s32.totalorder %s54, %s55
      %p69 = scmp.eq.s32.totalorder %s26, 1
      %p70 = por %p68, %p69
      %p72 = scmp.ne.s32.totalorder %s55, %s71
      %p73 = scmp.eq.s32.totalorder %s26, 0
      %p74 = por %p72, %p73
      %s75 = ssub.s32 %s27, %s46
      %s76 = ssub.s32 %s29, %s38
      %s77 = sor.u32 %s75, %s76
      %p78 = scmp.eq.s32.totalorder %s77, 0
      %s80 = sadd.s32 %s79, 1
      %s81 = scalar_select %p78, %s79, %s80
      %p84 = pneg %p78
      %p85 = scmp.eq.s32.totalorder %s20, 1
      %p86 = por %p84, %p85
      %p87 = scmp.ne.s32.totalorder %s79, %s82
      %p88 = scmp.eq.s32.totalorder %s20, 0
      %p89 = por %p87, %p88
      %p90 = scmp.ne.s32.totalorder %s79, %s82
      %p91 = scmp.eq.s32.totalorder %s25, 1
      %p92 = por %p90, %p91
      %p93 = scmp.ne.s32.totalorder %s82, %s83
      %p94 = scmp.eq.s32.totalorder %s25, 0
      %p95 = por %p93, %p94
      %p96 = scmp.ne.s32.totalorder %s82, %s83
      %p97 = scmp.eq.s32.totalorder %s26, 1
      %p98 = por %p96, %p97
      %p100 = scmp.ne.s32.totalorder %s83, %s99
      %p101 = scmp.eq.s32.totalorder %s26, 0
      %p102 = por %p100, %p101
      %s104 = sadd.s32 %s103, 1
      %p107 = scmp.eq.s32.totalorder %s20, 1
      %p108 = scmp.ne.s32.totalorder %s103, %s105
      %p109 = scmp.eq.s32.totalorder %s20, 0
      %p110 = por %p108, %p109
      %p111 = scmp.ne.s32.totalorder %s103, %s105
      %p112 = scmp.eq.s32.totalorder %s25, 1
      %p113 = por %p111, %p112
      %p114 = scmp.ne.s32.totalorder %s105, %s106
      %p115 = scmp.eq.s32.totalorder %s25, 0
      %p116 = por %p114, %p115
      %p117 = scmp.ne.s32.totalorder %s105, %s106
      %p118 = scmp.eq.s32.totalorder %s26, 1
      %p119 = por %p117, %p118
      %p121 = scmp.ne.s32.totalorder %s106, %s120
      %p122 = scmp.eq.s32.totalorder %s26, 0
      %p123 = por %p121, %p122
      %s125 = sadd.s32 %s124, 1
      %p128 = scmp.eq.s32.totalorder %s20, 1
      %p129 = scmp.ne.s32.totalorder %s124, %s126
      %p130 = scmp.eq.s32.totalorder %s20, 0
      %p131 = por %p129, %p130
      %p132 = scmp.ne.s32.totalorder %s124, %s126
      %p133 = scmp.eq.s32.totalorder %s25, 1
      %p134 = por %p132, %p133
      %p135 = scmp.ne.s32.totalorder %s126, %s127
      %p136 = scmp.eq.s32.totalorder %s25, 0
      %p137 = por %p135, %p136
      %p138 = scmp.ne.s32.totalorder %s126, %s127
      %p139 = scmp.eq.s32.totalorder %s26, 1
      %p140 = por %p138, %p139
      %p142 = scmp.ne.s32.totalorder %s127, %s141
      %p143 = scmp.eq.s32.totalorder %s26, 0
      %p144 = por %p142, %p143
      %s145 = ssub.s32 %s27, %s46
      %s146 = ssub.s32 %s28, %s42
      %s147 = sor.u32 %s145, %s146
      %p148 = scmp.eq.s32.totalorder %s147, 0
      %s150 = sadd.s32 %s149, 1
      %s151 = scalar_select %p148, %s149, %s150
      %p154 = pneg %p148
      %p155 = scmp.eq.s32.totalorder %s20, 1
      %p156 = por %p154, %p155
      %p157 = scmp.ne.s32.totalorder %s149, %s152
      %p158 = scmp.eq.s32.totalorder %s20, 0
      %p159 = por %p157, %p158
      %p160 = scmp.ne.s32.totalorder %s149, %s152
      %p161 = scmp.eq.s32.totalorder %s25, 1
      %p162 = por %p160, %p161
      %p163 = scmp.ne.s32.totalorder %s152, %s153
      %p164 = scmp.eq.s32.totalorder %s25, 0
      %p165 = por %p163, %p164
      %p166 = scmp.ne.s32.totalorder %s152, %s153
      %p167 = scmp.eq.s32.totalorder %s26, 1
      %p168 = por %p166, %p167
      %p170 = scmp.ne.s32.totalorder %s153, %s169
      %p171 = scmp.eq.s32.totalorder %s26, 0
      %p172 = por %p170, %p171
      %p173 = scmp.le.s32.totalorder 1, %s20
      %p174 = scmp.lt.s32.totalorder %s20, 3
      %p175 = pnand %p173, %p174
      %p176 = pneg %p175
      // Predicated region
      $region9: #{tpu_custom_call.1} parent=5 // pred_check
        _
      $region10: #{tpu_custom_call.1} parent=5 // pred_check_branch
        %178 = sbr.rel (%p175) target = $region12
      $region11: #{tpu_custom_call.1} parent=5 // pred_region
        %s179 = ssub.s32 %s20, 1
        // Predicated region
        $region13: #{tpu_custom_call.1} parent=11 // pred_check
          %p180 = pneg %p116
        $region14: #{tpu_custom_call.1} parent=11 // pred_check_branch
          %182 = sbr.rel (%p180) target = $region16
        $region15: #{tpu_custom_call.1} parent=11 // pred_region
          %s184 = ssub.s32 512, 512
          %185 = vsyncadd [#allocation10], %s184
          %s186 = sshll.u32 [#allocation11], 4
          %s187 = int_to_ptr.vmem [resolvable:$true] %s186
          %192 = dma.hbm_to_vmem [thread:$0]  %s2, 512, %s187, [#allocation10], 128, 128, 8
        $region16: #{tpu_custom_call.1} parent=11 // pred_fallthru
          _
        // Predicated region
        $region17: #{tpu_custom_call.1} parent=11 // pred_check
          %p193 = pneg %p137
        $region18: #{tpu_custom_call.1} parent=11 // pred_check_branch
          %195 = sbr.rel (%p193) target = $region20
        $region19: #{tpu_custom_call.1} parent=11 // pred_region
          %s197 = ssub.s32 1024, 1024
          %198 = vsyncadd [#allocation13], %s197
          %s199 = sshll.u32 [#allocation12], 4
          %s200 = int_to_ptr.vmem [resolvable:$true] %s199
          %205 = dma.hbm_to_vmem [thread:$0]  %s3, 1024, %s200, [#allocation13], 256, 256, 16
        $region20: #{tpu_custom_call.1} parent=11 // pred_fallthru
          _
      $region12: #{tpu_custom_call.1} parent=5 // pred_fallthru
        _
      %p206 = scmp.lt.s32.totalorder %s20, 2
      // Predicated region
      $region21: #{tpu_custom_call.1} parent=5 // pred_check
        %p207 = pneg %p206
      $region22: #{tpu_custom_call.1} parent=5 // pred_check_branch
        %209 = sbr.rel (%p207) target = $region24
      $region23: #{tpu_custom_call.1} parent=5 // pred_region
        // Predicated region
        $region25: #{tpu_custom_call.1} parent=23 // pred_check
          %p210 = pneg %p61
        $region26: #{tpu_custom_call.1} parent=23 // pred_check_branch
          %212 = sbr.rel (%p210) target = $region28
        $region27: #{tpu_custom_call.1} parent=23 // pred_region
          %s213 = sand.u32 %s51, 1
          %s214 = scalar_lea.sflag [#allocation7], %s213
          %s215 = sand.u32 %s51, 1
          %s216 = smul.addr %s215, 8
          %s217 = scalar_lea.vmem [#allocation6], %s216
          %s219 = ssub.s32 128, 128
          %220 = vsyncadd %s214, %s219
          %s221 = sadd.s32 %s28, %s27
          %s222 = smul.addr %s221, 128
          %s223 = scalar_lea.hbm %s0, %s222
          %s225 = sshll.u32 %s217, 4
          %s226 = int_to_ptr.vmem [resolvable:$true] %s225
          %228 = dma.hbm_to_vmem [thread:$0]  %s223, 128, %s226, %s214
        $region28: #{tpu_custom_call.1} parent=23 // pred_fallthru
          _
        // Predicated region
        $region29: #{tpu_custom_call.1} parent=23 // pred_check
          %p229 = pneg %p89
        $region30: #{tpu_custom_call.1} parent=23 // pred_check_branch
          %231 = sbr.rel (%p229) target = $region32
        $region31: #{tpu_custom_call.1} parent=23 // pred_region
          %s232 = sand.u32 %s20, 1
          %s233 = scalar_lea.sflag [#allocation10], %s232
          %s234 = sand.u32 %s79, 1
          %s235 = smul.addr %s234, 8
          %s236 = scalar_lea.vmem [#allocation9], %s235
          %s238 = ssub.s32 128, 128
          %239 = vsyncadd %s233, %s238
          %s240 = sadd.s32 %s29, %s27
          %s241 = smul.addr %s240, 128
          %s242 = scalar_lea.hbm %s1, %s241
          %s244 = sshll.u32 %s236, 4
          %s245 = int_to_ptr.vmem [resolvable:$true] %s244
          %247 = dma.hbm_to_vmem [thread:$0]  %s242, 128, %s245, %s233
        $region32: #{tpu_custom_call.1} parent=23 // pred_fallthru
          _
      $region24: #{tpu_custom_call.1} parent=5 // pred_fallthru
        _
      %p248 = scmp.le.s32.totalorder 1, %s20
      %p249 = scmp.lt.s32.totalorder %s20, 3
      %p250 = pnand %p248, %p249
      %p251 = pneg %p250
      // Predicated region
      $region33: #{tpu_custom_call.1} parent=5 // pred_check
        _
      $region34: #{tpu_custom_call.1} parent=5 // pred_check_branch
        %253 = sbr.rel (%p250) target = $region36
      $region35: #{tpu_custom_call.1} parent=5 // pred_region
        %s254 = ssub.s32 %s20, 1
        %s255 = sand.u32 %s54, 1
        %s256 = scalar_lea.sflag [#allocation7], %s255
        %s257 = sand.u32 %s54, 1
        %s258 = smul.addr %s257, 8
        %s259 = scalar_lea.vmem [#allocation6], %s258
        // Predicated region
        $region37: #{tpu_custom_call.1} parent=35 // pred_check
          %p260 = pneg %p67
        $region38: #{tpu_custom_call.1} parent=35 // pred_check_branch
          %262 = sbr.rel (%p260) target = $region40
        $region39: #{tpu_custom_call.1} parent=35 // pred_region
          %263 = dma.done %s256, 128
        $region40: #{tpu_custom_call.1} parent=35 // pred_fallthru
          _
        %s264 = sand.u32 %s25, 1
        %s265 = scalar_lea.sflag [#allocation10], %s264
        %s266 = sand.u32 %s82, 1
        %s267 = smul.addr %s266, 8
        %s268 = scalar_lea.vmem [#allocation9], %s267
        // Predicated region
        $region41: #{tpu_custom_call.1} parent=35 // pred_check
          %p269 = pneg %p95
        $region42: #{tpu_custom_call.1} parent=35 // pred_check_branch
          %271 = sbr.rel (%p269) target = $region44
        $region43: #{tpu_custom_call.1} parent=35 // pred_region
          %272 = dma.done %s265, 128
        $region44: #{tpu_custom_call.1} parent=35 // pred_fallthru
          _
        // Predicated region
        $region45: #{tpu_custom_call.1} parent=35 // pred_check
          %p273 = pneg %p116
        $region46: #{tpu_custom_call.1} parent=35 // pred_check_branch
          %275 = sbr.rel (%p273) target = $region48
        $region47: #{tpu_custom_call.1} parent=35 // pred_region
          %276 = dma.done [#allocation10], 512
        $region48: #{tpu_custom_call.1} parent=35 // pred_fallthru
          _
        // Predicated region
        $region49: #{tpu_custom_call.1} parent=35 // pred_check
          %p277 = pneg %p137
        $region50: #{tpu_custom_call.1} parent=35 // pred_check_branch
          %279 = sbr.rel (%p277) target = $region52
        $region51: #{tpu_custom_call.1} parent=35 // pred_region
          %280 = dma.done [#allocation13], 1024
        $region52: #{tpu_custom_call.1} parent=35 // pred_fallthru
          _
        %s281 = sand.u32 %s54, 1
        %s282 = scalar_lea.sflag [#allocation7], %s281
        %s283 = sand.u32 %s54, 1
        %s284 = smul.addr %s283, 8
        %s285 = scalar_lea.vmem [#allocation6], %s284
        %p286 = pneg %p67
        %p287 = pneg %p64
        %s288 = sand.u32 %s25, 1
        %s289 = scalar_lea.sflag [#allocation10], %s288
        %s290 = sand.u32 %s82, 1
        %s291 = smul.addr %s290, 8
        %s292 = scalar_lea.vmem [#allocation9], %s291
        %p293 = pneg %p95
        %p294 = pneg %p92
        %p295 = pneg %p116
        %p296 = pneg %p113
        %p297 = pneg %p137
        %p298 = pneg %p134
        %p299 = pneg %p165
        %p300 = pneg %p162
        %s301 = sand.u32 %s152, 1
        %s302 = scalar_lea.sflag [#allocation8], %s301
        %s303 = sand.u32 %s152, 1
        %s304 = smul.addr %s303, 8
        %s305 = scalar_lea.vmem [#allocation14], %s304
        %s306 = smul.u32 %s31, 8
        %s307 = smul.u32 %s32, 8
        %p308 = scmp.eq.s32.totalorder %s32, 0
        // Predicated region
        $region53: #{tpu_custom_call.1} parent=35 // pred_check
          %p309 = pneg %p308
        $region54: #{tpu_custom_call.1} parent=35 // pred_check_branch
          %311 = sbr.rel (%p309) target = $region56
        $region55: #{tpu_custom_call.1} parent=35 // pred_region
          %v312 = vld [vmem:[%s259] sm:$0xff]
          %v313 = vld [vmem:[#allocation11] sm:$0xff]
          %v314 = vld [vmem:[#allocation11 + $0x8] sm:$0xff]
          %v315 = vld [vmem:[#allocation11 + $0x10] sm:$0xff]
          %v316 = vld [vmem:[#allocation11 + $0x18] sm:$0xff]
          %vm317 = vcmask 261120
          %v319 = vsel %vm317, %v312, 0
          %321 = vmatprep.subr.mxu0 0.0
          %322 = vmatpush1.msra.mxu0 %v313
          %323 = vmatprep.subr.mxu0 0.0
          %324 = vmatpush1.msra.mxu0 %v314
          %325 = vmatprep.subr.mxu0 0.0
          %326 = vmatpush1.msra.mxu0 %v315
          %327 = vmatprep.subr.mxu0 0.0
          %328 = vmatpush1.msra.mxu0 %v316
          %329 = vmatprep.subr.mxu0 0.0
          %330 = vmatpush1.msra.mxu0 0.0
          %331 = vmatprep.subr.mxu0 0.0
          %332 = vmatpush1.msra.mxu0 0.0
          %333 = vmatprep.subr.mxu0 0.0
          %334 = vmatpush1.msra.mxu0 0.0
          %335 = vmatprep.subr.mxu0 0.0
          %336 = vmatpush1.msra.mxu0 0.0
          %337 = vmatprep.subr.mxu0 0.0
          %338 = vmatpush1.msra.mxu0 0.0
          %339 = vmatprep.subr.mxu0 0.0
          %340 = vmatpush1.msra.mxu0 0.0
          %341 = vmatprep.subr.mxu0 0.0
          %342 = vmatpush1.msra.mxu0 0.0
          %343 = vmatprep.subr.mxu0 0.0
          %344 = vmatpush1.msra.mxu0 0.0
          %345 = vmatprep.subr.mxu0 0.0
          %346 = vmatpush1.msra.mxu0 0.0
          %347 = vmatprep.subr.mxu0 0.0
          %348 = vmatpush1.msra.mxu0 0.0
          %349 = vmatprep.subr.mxu0 0.0
          %350 = vmatpush1.msra.mxu0 0.0
          %351 = vmatprep.subr.mxu0 0.0
          %352 = vmatpush1.msra.mxu0 0.0
          %353 = vmatprep.subr.mxu0 0.0
          %354 = vmatpush1.msra.mxu0 0.0
          %355 = vmatprep.subr.mxu0 0.0
          %356 = vmatpush1.msra.mxu0 0.0
          %357 = vmatprep.subr.mxu0 0.0
          %358 = vmatpush1.msra.mxu0 0.0
          %359 = vmatprep.subr.mxu0 0.0
          %360 = vmatpush1.msra.mxu0 0.0
          %361 = vmatprep.subr.mxu0 0.0
          %362 = vmatpush1.msra.mxu0 0.0
          %363 = vmatprep.subr.mxu0 0.0
          %364 = vmatpush1.msra.mxu0 0.0
          %365 = vmatprep.subr.mxu0 0.0
          %366 = vmatpush1.msra.mxu0 0.0
          %367 = vmatprep.subr.mxu0 0.0
          %368 = vmatpush1.msra.mxu0 0.0
          %369 = vmatprep.subr.mxu0 0.0
          %370 = vmatpush1.msra.mxu0 0.0
          %371 = vmatprep.subr.mxu0 0.0
          %372 = vmatpush1.msra.mxu0 0.0
          %373 = vmatprep.subr.mxu0 0.0
          %374 = vmatpush1.msra.mxu0 0.0
          %375 = vmatprep.subr.mxu0 0.0
          %376 = vmatpush1.msra.mxu0 0.0
          %377 = vmatprep.subr.mxu0 0.0
          %378 = vmatpush1.msra.mxu0 0.0
          %379 = vmatprep.subr.mxu0 0.0
          %380 = vmatpush1.msra.mxu0 0.0
          %381 = vmatprep.subr.mxu0 0.0
          %382 = vmatpush1.msra.mxu0 0.0
          %383 = vmatprep.subr.mxu0 0.0
          %384 = vmatpush1.msra.mxu0 0.0
          %385 = vmatprep.mubr.f32.mxu0 0.0
          %386 = vmatmul.mubr.f32.gmra.mrb[0].mxu0 %v319
          %v387 = vpop.f32.mrb[0].mxu0
          %v388 = vadd.f32 0.0, %v387
          %v389 = vpop.f32.mrb[0].mxu0
          %390 = vdwg.mxu0
          %391 = vst [vmem:[#allocation2] sm:$0xff] %v388
          %vm392 = vcmask 7168
          %393 = vst.msk [vmem:[#allocation3] sm:$0xff] %vm392, -1e+30
          %394 = vst.msk [vmem:[#allocation4] sm:$0xff] %vm392, 0.0
          %395 = vst.msk [vmem:[#allocation5] sm:$0xff] %vm317, 0.0
        $region56: #{tpu_custom_call.1} parent=35 // pred_fallthru
          _
        %s396 = sadd.s32 %s306, 7
        %p397 = scmp.le.s32.totalorder %s307, %s396
        // Predicated region
        $region57: #{tpu_custom_call.1} parent=35 // pred_check
          %p398 = pneg %p397
        $region58: #{tpu_custom_call.1} parent=35 // pred_check_branch
          %400 = sbr.rel (%p398) target = $region60
        $region59: #{tpu_custom_call.1} parent=35 // pred_region
          %v401 = vld [vmem:[%s268] sm:$0xff]
          %v402 = vld [vmem:[#allocation12] sm:$0xff]
          %v403 = vld [vmem:[#allocation12 + $0x8] sm:$0xff]
          %v404 = vld [vmem:[#allocation12 + $0x10] sm:$0xff]
          %v405 = vld [vmem:[#allocation12 + $0x18] sm:$0xff]
          %v406 = vld [vmem:[#allocation12 + $0x20] sm:$0xff]
          %v407 = vld [vmem:[#allocation12 + $0x28] sm:$0xff]
          %v408 = vld [vmem:[#allocation12 + $0x30] sm:$0xff]
          %v409 = vld [vmem:[#allocation12 + $0x38] sm:$0xff]
          %vm410 = vcmask 261120
          %v412 = vsel %vm410, %v401, 0
          %414 = vmatprep.subr.mxu0 %v403
          %415 = vmatpush1.msra.mxu0 %v402
          %416 = vmatprep.subr.mxu0 %v405
          %417 = vmatpush1.msra.mxu0 %v404
          %418 = vmatprep.subr.mxu0 %v407
          %419 = vmatpush1.msra.mxu0 %v406
          %420 = vmatprep.subr.mxu0 %v409
          %421 = vmatpush1.msra.mxu0 %v408
          %422 = vmatprep.subr.mxu0 0.0
          %423 = vmatpush1.msra.mxu0 0.0
          %424 = vmatprep.subr.mxu0 0.0
          %425 = vmatpush1.msra.mxu0 0.0
          %426 = vmatprep.subr.mxu0 0.0
          %427 = vmatpush1.msra.mxu0 0.0
          %428 = vmatprep.subr.mxu0 0.0
          %429 = vmatpush1.msra.mxu0 0.0
          %430 = vmatprep.subr.mxu0 0.0
          %431 = vmatpush1.msra.mxu0 0.0
          %432 = vmatprep.subr.mxu0 0.0
          %433 = vmatpush1.msra.mxu0 0.0
          %434 = vmatprep.subr.mxu0 0.0
          %435 = vmatpush1.msra.mxu0 0.0
          %436 = vmatprep.subr.mxu0 0.0
          %437 = vmatpush1.msra.mxu0 0.0
          %438 = vmatprep.subr.mxu0 0.0
          %439 = vmatpush1.msra.mxu0 0.0
          %440 = vmatprep.subr.mxu0 0.0
          %441 = vmatpush1.msra.mxu0 0.0
          %442 = vmatprep.subr.mxu0 0.0
          %443 = vmatpush1.msra.mxu0 0.0
          %444 = vmatprep.subr.mxu0 0.0
          %445 = vmatpush1.msra.mxu0 0.0
          %446 = vmatprep.subr.mxu0 0.0
          %447 = vmatpush1.msra.mxu0 0.0
          %448 = vmatprep.subr.mxu0 0.0
          %449 = vmatpush1.msra.mxu0 0.0
          %450 = vmatprep.subr.mxu0 0.0
          %451 = vmatpush1.msra.mxu0 0.0
          %452 = vmatprep.subr.mxu0 0.0
          %453 = vmatpush1.msra.mxu0 0.0
          %454 = vmatprep.subr.mxu0 0.0
          %455 = vmatpush1.msra.mxu0 0.0
          %456 = vmatprep.subr.mxu0 0.0
          %457 = vmatpush1.msra.mxu0 0.0
          %458 = vmatprep.subr.mxu0 0.0
          %459 = vmatpush1.msra.mxu0 0.0
          %460 = vmatprep.subr.mxu0 0.0
          %461 = vmatpush1.msra.mxu0 0.0
          %462 = vmatprep.subr.mxu0 0.0
          %463 = vmatpush1.msra.mxu0 0.0
          %464 = vmatprep.subr.mxu0 0.0
          %465 = vmatpush1.msra.mxu0 0.0
          %466 = vmatprep.subr.mxu0 0.0
          %467 = vmatpush1.msra.mxu0 0.0
          %468 = vmatprep.subr.mxu0 0.0
          %469 = vmatpush1.msra.mxu0 0.0
          %470 = vmatprep.subr.mxu0 0.0
          %471 = vmatpush1.msra.mxu0 0.0
          %472 = vmatprep.subr.mxu0 0.0
          %473 = vmatpush1.msra.mxu0 0.0
          %474 = vmatprep.subr.mxu0 0.0
          %475 = vmatpush1.msra.mxu0 0.0
          %476 = vmatprep.subr.mxu0 0.0
          %477 = vmatpush1.msra.mxu0 0.0
          %478 = vmatprep.mubr.f32.mxu0 0.0
          %479 = vmatmul.mubr.f32.gmra.mrb[0].mxu0 %v412
          %v480 = vpop.f32.mrb[0].mxu0
          %v481 = vadd.f32 0.0, %v480
          %v482 = vpop.f32.mrb[0].mxu0
          %v483 = vadd.f32 0.0, %v482
          %484 = vdwg.mxu0
          %v485 = vld [vmem:[#allocation2] sm:$0xff]
          %486 = vmatprep.subr.mxu0 0.0
          %487 = vmatpush1.xpose.msra.mxu0 %v481
          %488 = vmatprep.subr.mxu0 0.0
          %489 = vmatpush1.xpose.msra.mxu0 0.0
          %490 = vmatprep.subr.mxu0 0.0
          %491 = vmatpush1.xpose.msra.mxu0 0.0
          %492 = vmatprep.subr.mxu0 0.0
          %493 = vmatpush1.xpose.msra.mxu0 0.0
          %494 = vmatprep.subr.mxu0 0.0
          %495 = vmatpush1.xpose.msra.mxu0 0.0
          %496 = vmatprep.subr.mxu0 0.0
          %497 = vmatpush1.xpose.msra.mxu0 0.0
          %498 = vmatprep.subr.mxu0 0.0
          %499 = vmatpush1.xpose.msra.mxu0 0.0
          %500 = vmatprep.subr.mxu0 0.0
          %501 = vmatpush1.xpose.msra.mxu0 0.0
          %502 = vmatprep.subr.mxu0 0.0
          %503 = vmatpush1.xpose.msra.mxu0 0.0
          %504 = vmatprep.subr.mxu0 0.0
          %505 = vmatpush1.xpose.msra.mxu0 0.0
          %506 = vmatprep.subr.mxu0 0.0
          %507 = vmatpush1.xpose.msra.mxu0 0.0
          %508 = vmatprep.subr.mxu0 0.0
          %509 = vmatpush1.xpose.msra.mxu0 0.0
          %510 = vmatprep.subr.mxu0 0.0
          %511 = vmatpush1.xpose.msra.mxu0 0.0
          %512 = vmatprep.subr.mxu0 0.0
          %513 = vmatpush1.xpose.msra.mxu0 0.0
          %514 = vmatprep.subr.mxu0 0.0
          %515 = vmatpush1.xpose.msra.mxu0 0.0
          %516 = vmatprep.subr.mxu0 0.0
          %517 = vmatpush1.xpose.msra.mxu0 0.0
          %518 = vmatprep.subr.mxu0 0.0
          %519 = vmatpush1.xpose.msra.mxu0 0.0
          %520 = vmatprep.subr.mxu0 0.0
          %521 = vmatpush1.xpose.msra.mxu0 0.0
          %522 = vmatprep.subr.mxu0 0.0
          %523 = vmatpush1.xpose.msra.mxu0 0.0
          %524 = vmatprep.subr.mxu0 0.0
          %525 = vmatpush1.xpose.msra.mxu0 0.0
          %526 = vmatprep.subr.mxu0 0.0
          %527 = vmatpush1.xpose.msra.mxu0 0.0
          %528 = vmatprep.subr.mxu0 0.0
          %529 = vmatpush1.xpose.msra.mxu0 0.0
          %530 = vmatprep.subr.mxu0 0.0
          %531 = vmatpush1.xpose.msra.mxu0 0.0
          %532 = vmatprep.subr.mxu0 0.0
          %533 = vmatpush1.xpose.msra.mxu0 0.0
          %534 = vmatprep.subr.mxu0 0.0
          %535 = vmatpush1.xpose.msra.mxu0 0.0
          %536 = vmatprep.subr.mxu0 0.0
          %537 = vmatpush1.xpose.msra.mxu0 0.0
          %538 = vmatprep.subr.mxu0 0.0
          %539 = vmatpush1.xpose.msra.mxu0 0.0
          %540 = vmatprep.subr.mxu0 0.0
          %541 = vmatpush1.xpose.msra.mxu0 0.0
          %542 = vmatprep.subr.mxu0 0.0
          %543 = vmatpush1.xpose.msra.mxu0 0.0
          %544 = vmatprep.subr.mxu0 0.0
          %545 = vmatpush1.xpose.msra.mxu0 0.0
          %546 = vmatprep.subr.mxu0 0.0
          %547 = vmatpush1.xpose.msra.mxu0 0.0
          %548 = vmatprep.subr.mxu0 0.0
          %549 = vmatpush1.xpose.msra.mxu0 0.0
          %550 = vmatprep.mubr.f32.mxu0 0.0
          %551 = vmatmul.mubr.f32.gmra.mrb[0].mxu0 %v485
          %v552 = vpop.f32.mrb[0].mxu0
          %v553 = vadd.f32 0.0, %v552
          %v554 = vpop.f32.mrb[0].mxu0
          %555 = vdwg.mxu0
          %v556 = vlaneseq
          %v557 = vshrl.u32 %v556, 7
          %v558 = vstv %s306
          %v559 = vadd.s32 %v557, %v558
          %v560 = vlaneseq
          %v561 = vand.u32 %v560, 127
          %v562 = vstv %s307
          %v563 = vadd.s32 %v561, %v562
          %vm564 = vcmp.le.s32.totalorder %v563, %v559
          %v565 = vsel %vm564, %v553, -1e+30
          %v566 = vld [vmem:[#allocation3] sm:$0xff]
          %vm567 = vcmask 64512
          %v568 = vsel %vm567, %v565, -inf
          %569 = vmax.xlane.f32.xlu0 %v568
          %v570 = vpop.xlane.xlu0 %569
          %v571 = vmax.f32 %v566, %v570
          %v572 = vsub.f32 %v566, %v571
          %v573 = vmul.f32 %v572, 1.442695
          %v574 = vpow.pop %v573
          %576 = vset.pattern.permute.xlu0 0
          %577 = vperm.xlu0 %576, %v571
          %v578 = vpop.permute.xlu0 %577
          %v580 = vsub.f32 %v565, %v578
          %v581 = vmul.f32 %v580, 1.442695
          %v582 = vpow.pop %v581
          %v583 = vld [vmem:[#allocation4] sm:$0xff]
          %v584 = vmul.f32 %v574, %v583
          %v585 = vsel %vm567, %v582, 0.0
          %586 = vadd.xlane.f32.xlu0 %v585
          %v587 = vpop.xlane.xlu0 %586
          %v588 = vadd.f32 %v584, %v587
          %vm589 = vcmask 7168
          %590 = vst.msk [vmem:[#allocation4] sm:$0xff] %vm589, %v588
          %v592 = vsel %vm567, %v582, 0
          %594 = vmatprep.subr.mxu0 0.0
          %595 = vmatpush1.msra.mxu0 %v483
          %596 = vmatprep.subr.mxu0 0.0
          %597 = vmatpush1.msra.mxu0 0.0
          %598 = vmatprep.subr.mxu0 0.0
          %599 = vmatpush1.msra.mxu0 0.0
          %600 = vmatprep.subr.mxu0 0.0
          %601 = vmatpush1.msra.mxu0 0.0
          %602 = vmatprep.subr.mxu0 0.0
          %603 = vmatpush1.msra.mxu0 0.0
          %604 = vmatprep.subr.mxu0 0.0
          %605 = vmatpush1.msra.mxu0 0.0
          %606 = vmatprep.subr.mxu0 0.0
          %607 = vmatpush1.msra.mxu0 0.0
          %608 = vmatprep.subr.mxu0 0.0
          %609 = vmatpush1.msra.mxu0 0.0
          %610 = vmatprep.subr.mxu0 0.0
          %611 = vmatpush1.msra.mxu0 0.0
          %612 = vmatprep.subr.mxu0 0.0
          %613 = vmatpush1.msra.mxu0 0.0
          %614 = vmatprep.subr.mxu0 0.0
          %615 = vmatpush1.msra.mxu0 0.0
          %616 = vmatprep.subr.mxu0 0.0
          %617 = vmatpush1.msra.mxu0 0.0
          %618 = vmatprep.subr.mxu0 0.0
          %619 = vmatpush1.msra.mxu0 0.0
          %620 = vmatprep.subr.mxu0 0.0
          %621 = vmatpush1.msra.mxu0 0.0
          %622 = vmatprep.subr.mxu0 0.0
          %623 = vmatpush1.msra.mxu0 0.0
          %624 = vmatprep.subr.mxu0 0.0
          %625 = vmatpush1.msra.mxu0 0.0
          %626 = vmatprep.subr.mxu0 0.0
          %627 = vmatpush1.msra.mxu0 0.0
          %628 = vmatprep.subr.mxu0 0.0
          %629 = vmatpush1.msra.mxu0 0.0
          %630 = vmatprep.subr.mxu0 0.0
          %631 = vmatpush1.msra.mxu0 0.0
          %632 = vmatprep.subr.mxu0 0.0
          %633 = vmatpush1.msra.mxu0 0.0
          %634 = vmatprep.subr.mxu0 0.0
          %635 = vmatpush1.msra.mxu0 0.0
          %636 = vmatprep.subr.mxu0 0.0
          %637 = vmatpush1.msra.mxu0 0.0
          %638 = vmatprep.subr.mxu0 0.0
          %639 = vmatpush1.msra.mxu0 0.0
          %640 = vmatprep.subr.mxu0 0.0
          %641 = vmatpush1.msra.mxu0 0.0
          %642 = vmatprep.subr.mxu0 0.0
          %643 = vmatpush1.msra.mxu0 0.0
          %644 = vmatprep.subr.mxu0 0.0
          %645 = vmatpush1.msra.mxu0 0.0
          %646 = vmatprep.subr.mxu0 0.0
          %647 = vmatpush1.msra.mxu0 0.0
          %648 = vmatprep.subr.mxu0 0.0
          %649 = vmatpush1.msra.mxu0 0.0
          %650 = vmatprep.subr.mxu0 0.0
          %651 = vmatpush1.msra.mxu0 0.0
          %652 = vmatprep.subr.mxu0 0.0
          %653 = vmatpush1.msra.mxu0 0.0
          %654 = vmatprep.subr.mxu0 0.0
          %655 = vmatpush1.msra.mxu0 0.0
          %656 = vmatprep.subr.mxu0 0.0
          %657 = vmatpush1.msra.mxu0 0.0
          %658 = vmatprep.mubr.f32.mxu0 0.0
          %659 = vmatmul.mubr.f32.gmra.mrb[0].mxu0 %v592
          %v660 = vpop.f32.mrb[0].mxu0
          %v661 = vadd.f32 0.0, %v660
          %v662 = vpop.f32.mrb[0].mxu0
          %663 = vdwg.mxu0
          %v664 = vld [vmem:[#allocation5] sm:$0xff]
          %666 = vset.pattern.permute.xlu0 0
          %667 = vperm.xlu0 %666, %v574
          %v668 = vpop.permute.xlu0 %667
          %v670 = vmul.f32 %v668, %v664
          %v671 = vadd.f32 %v670, %v661
          %672 = vst.msk [vmem:[#allocation5] sm:$0xff] %vm410, %v671
          %673 = vst.msk [vmem:[#allocation3] sm:$0xff] %vm589, %v571
        $region60: #{tpu_custom_call.1} parent=35 // pred_fallthru
          _
        // Predicated region
        $region61: #{tpu_custom_call.1} parent=35 // pred_check
          %p674 = pneg %p308
        $region62: #{tpu_custom_call.1} parent=35 // pred_check_branch
          %676 = sbr.rel (%p674) target = $region64
        $region63: #{tpu_custom_call.1} parent=35 // pred_region
          %v677 = vld [vmem:[#allocation4] sm:$0xff]
          %v678 = vrcp.pop %v677
          %v679 = vld [vmem:[#allocation5] sm:$0xff]
          %681 = vset.pattern.permute.xlu0 0
          %682 = vperm.xlu0 %681, %v678
          %v683 = vpop.permute.xlu0 %682
          %v685 = vmul.f32 %v679, %v683
          %vm686 = vcmask 261120
          %687 = vst.msk [vmem:[%s305] sm:$0xff] %vm686, %v685
        $region64: #{tpu_custom_call.1} parent=35 // pred_fallthru
          _
        %s688 = sand.u32 %s152, 1
        %s689 = scalar_lea.sflag [#allocation8], %s688
        %s690 = sand.u32 %s152, 1
        %s691 = smul.addr %s690, 8
        %s692 = scalar_lea.vmem [#allocation14], %s691
        // Predicated region
        $region65: #{tpu_custom_call.1} parent=35 // pred_check
          %p693 = pneg %p162
        $region66: #{tpu_custom_call.1} parent=35 // pred_check_branch
          %695 = sbr.rel (%p693) target = $region68
        $region67: #{tpu_custom_call.1} parent=35 // pred_region
          %s697 = ssub.s32 128, 128
          %698 = vsyncadd %s689, %s697
          %s699 = sadd.s32 %s31, %s30
          %s700 = smul.addr %s699, 128
          %s701 = scalar_lea.hbm %s4, %s700
          %s703 = sshll.u32 %s692, 4
          %s704 = int_to_ptr.vmem [resolvable:$true] %s703
          %706 = dma.vmem_to_hbm [thread:$0]  %s704, 128, %s701, %s689
        $region68: #{tpu_custom_call.1} parent=35 // pred_fallthru
          _
      $region36: #{tpu_custom_call.1} parent=5 // pred_fallthru
        _
      %p707 = scmp.le.s32.totalorder 2, %s20
      // Predicated region
      $region69: #{tpu_custom_call.1} parent=5 // pred_check
        %p708 = pneg %p707
      $region70: #{tpu_custom_call.1} parent=5 // pred_check_branch
        %710 = sbr.rel (%p708) target = $region72
      $region71: #{tpu_custom_call.1} parent=5 // pred_region
        %s711 = ssub.s32 %s20, 2
        // Predicated region
        $region73: #{tpu_custom_call.1} parent=71 // pred_check
          %p712 = pneg %p168
        $region74: #{tpu_custom_call.1} parent=71 // pred_check_branch
          %714 = sbr.rel (%p712) target = $region76
        $region75: #{tpu_custom_call.1} parent=71 // pred_region
          %s715 = sand.u32 %s153, 1
          %s716 = scalar_lea.sflag [#allocation8], %s715
          %s717 = sand.u32 %s153, 1
          %s718 = smul.addr %s717, 8
          %s719 = scalar_lea.vmem [#allocation14], %s718
          %720 = dma.done %s716, 128
        $region76: #{tpu_custom_call.1} parent=71 // pred_fallthru
          _
      $region72: #{tpu_custom_call.1} parent=5 // pred_fallthru
        _
    $region6: #{tpu_custom_call.1} parent=1 // loop_footer
      %s24 = sadd.s32 1, %s20
    $region7: #{tpu_custom_call.1} parent=1 // loop_footer_branch
      %19 = sbr.rel target = $region3
    $region8: #{tpu_custom_call.1} parent=1 // loop_exit
      _
    %721 = vsyncpa [#allocation7], 1
    %s722 = scalar_lea.sflag [#allocation7], 1
    %723 = vsyncpa %s722, 1
    %724 = vsyncpa [#allocation10], 1
    %s725 = scalar_lea.sflag [#allocation10], 1
    %726 = vsyncpa %s725, 1
    %727 = vsyncpa [#allocation13], 1
    %728 = vsyncpa [#allocation8], 1
    %s729 = scalar_lea.sflag [#allocation8], 1
    %730 = vsyncpa %s729, 1

</llo_original>
